<compile_context>
chip_gen: v5e
topology: v5e:2x2
jax: 0.10.0
libtpu: 0.0.40
codegen_flags: <defaults>
</compile_context>

<pallas_src>
import jax
import jax.numpy as jnp
from jax.experimental import pallas as pl
from jax.experimental.pallas import tpu as pltpu

_MIB = 1024 * 1024


def attention_kernel(v_ref, qf_ref, wv_ref, wg_ref, bg_ref, o_ref):
    """One (batch-block, HW-tile) grid step.

    v_ref : (NB, Cv, THW)  image-feature tile, spatial axis on TPU lanes
    qf_ref: (NB, A, 1)     precomputed q_linear output (f32) for these batches
    wv_ref: (A, Cv)        v_conv weight (dtype matched to v)
    wg_ref: (G, A)         glimpses_conv weight
    bg_ref: (G, 1)         glimpses_conv bias (f32)
    o_ref : (NB, G, THW)
    """
    wv = wv_ref[...]
    wg = wg_ref[...]
    bg = bg_ref[...]
    nb = v_ref.shape[0]                      # compile-time constant
    for i in range(nb):
        # v_conv (1x1 conv, no bias): contract channels, HW stays on lanes.
        v_feat = jnp.dot(wv, v_ref[i], preferred_element_type=jnp.float32)  # (A, THW)
        # tile_2d + ReLU: lane-broadcast the (A, 1) q_feat column; f32 VPU math.
        vq = jnp.maximum(v_feat + qf_ref[i], 0.0)                           # (A, THW)
        # glimpses_conv (1x1 conv with bias). vq stays f32 -- no extra VPU cast;
        # with small G the MXU cost is negligible in either precision.
        g = jnp.dot(wg, vq, preferred_element_type=jnp.float32) + bg        # (G, THW)
        o_ref[i] = g.astype(o_ref.dtype)


def _vmem_capacity_bytes(default=64 * _MIB):
    """Physical per-core VMEM; conservative (v7x) default if the query fails."""
    try:
        info = pltpu.get_tpu_info()
        for name in ("vmem_capacity_bytes", "vmem_size_bytes", "vmem_bytes"):
            cap = getattr(info, name, None)
            if cap:
                return int(cap)
    except Exception:
        pass
    return default


def _pick_hw_tile(hw, max_lanes):
    """HW tile: full extent for small HW, otherwise the largest multiple of 128
    <= max_lanes, preferring one that divides HW; if none divides, a cdiv grid
    with a clipped edge block is used (never a budget-busting full-extent tile).
    """
    if hw <= 128:
        return hw
    cap = max(128, min(max_lanes, (hw // 128) * 128))
    for t in range(cap, 127, -128):
        if hw % t == 0:
            return t
    return cap


def _choose_tiling(N, Cv, G, A, HW, v_isz, o_isz, w_isz):
    """Pick (batch block NB, HW tile thw, hw grid, vmem_limit) from a VMEM budget."""
    cap = _vmem_capacity_bytes()
    # Single-buffered, grid-invariant weights stay resident the whole time.
    weight_resident = A * Cv * w_isz + G * A * 4 + G * 4
    # Smaller tile fraction on 64 MiB-VMEM parts (v7x, 2 TCs/chip) than on the
    # 128 MiB parts (v5e/v6e), where bigger tiles amortize per-step overhead.
    tile_frac = 0.30 if cap <= 64 * _MIB else 0.50
    tile_budget = max(4 * _MIB, int(tile_frac * cap) - weight_resident)

    # Double-buffered v-tile + out-tile bytes per lane (NB = 1).
    per_lane = 2 * (Cv * v_isz + G * o_isz)
    max_lanes = max(128, (tile_budget // per_lane) // 128 * 128)
    thw = _pick_hw_tile(HW, max_lanes)
    n_hw = -(-HW // thw)

    # Batch-block small feature maps (per-step-overhead regime), but keep at
    # least 2 grid steps so both TensorCores on v7x get work.
    NB = 1
    if n_hw == 1 and HW <= 1024 and N > 1:
        per_batch = 2 * thw * (Cv * v_isz + G * o_isz) + 2 * A * 4
        NB = int(min(max(1, tile_budget // per_batch), max(1, N // 2), N))
        while N % NB:
            NB -= 1

    # N == 1 with a single HW tile: split HW so the grid still has >= 2 steps.
    if N // NB == 1 and n_hw == 1 and thw >= 256:
        thw = ((thw // 2 + 127) // 128) * 128
        n_hw = -(-HW // thw)

    tile_bytes = 2 * NB * thw * (Cv * v_isz + G * o_isz) + 2 * NB * A * 4
    vmem_limit = int(min(int(0.9 * cap),
                         max(32 * _MIB, 3 * (tile_bytes + weight_resident) // 2)))
    return NB, thw, n_hw, vmem_limit


def attention_forward(v_nchw, q, w_v, w_q, b_q, w_g, b_g, *, out_dtype=None):
    """Forward pass of the Attention module (dropout = identity).

    v_nchw: (N, Cv, H, W)   q: (N, Q)
    w_v: (A, Cv)            == v_conv.weight.reshape(A, Cv)        (no bias)
    w_q: (A, Q), b_q: (A,)  == q_linear.weight / .bias
    w_g: (G, A), b_g: (G,)  == glimpses_conv.weight.reshape(G, A) / .bias
    Returns glimpses in NCHW: (N, G, H, W), dtype `out_dtype` (default v dtype).

    If v arrives in bf16 the first matmul uses the native bf16 MXU path on all
    generations (v is never recast here -- that would cost an extra HBM pass).
    """
    N, Cv, H, W = v_nchw.shape
    A = w_v.shape[0]
    G = w_g.shape[0]
    HW = H * W
    if out_dtype is None:
        out_dtype = v_nchw.dtype

    # Free reshapes only -- no transposes on either side of the kernel.
    v_flat = v_nchw.reshape(N, Cv, HW)
    # Match the v_conv weight dtype to v (tiny cast) so the first matmul hits
    # the native MXU path; v itself is never recast in the wrapper.
    w_v_k = w_v.astype(v_flat.dtype)
    b_g_col = b_g.astype(jnp.float32).reshape(G, 1)

    # q path hoisted out of the per-tile kernel: a lane-sparse (A,Q)@(Q,1)
    # matvec that would otherwise be recomputed for every HW tile.
    q_feat = (q.astype(jnp.float32) @ w_q.astype(jnp.float32).T
              + b_q.astype(jnp.float32)).reshape(N, A, 1)

    v_isz = jnp.dtype(v_flat.dtype).itemsize
    o_isz = jnp.dtype(out_dtype).itemsize
    w_isz = jnp.dtype(w_v_k.dtype).itemsize
    wg_isz = jnp.dtype(w_g.dtype).itemsize

    NB, thw, n_hw, vmem_limit = _choose_tiling(N, Cv, G, A, HW, v_isz, o_isz, w_isz)
    n_b = N // NB

    flops = int(2 * N * HW * A * (Cv + G))
    bytes_accessed = int(N * Cv * HW * v_isz + N * G * HW * o_isz
                         + N * A * 4 + A * Cv * w_isz + G * A * wg_isz + G * 4)
    cost = pl.CostEstimate(flops=flops, transcendentals=0,
                           bytes_accessed=bytes_accessed)

    def run(weight_buffer_count):
        def wspec(shape):
            # Grid-invariant operands: single-buffer to free VMEM for HW tiles.
            if weight_buffer_count == 1:
                return pl.BlockSpec(shape, lambda b, h: (0, 0),
                                    pipeline_mode=pl.Buffered(1))
            return pl.BlockSpec(shape, lambda b, h: (0, 0))

        out = pl.pallas_call(
            attention_kernel,
            out_shape=jax.ShapeDtypeStruct((N, G, HW), out_dtype),
            grid_spec=pltpu.PrefetchScalarGridSpec(
                num_scalar_prefetch=0,
                grid=(n_b, n_hw),
                in_specs=[
                    pl.BlockSpec((NB, Cv, thw), lambda b, h: (b, 0, h)),  # v tile
                    pl.BlockSpec((NB, A, 1), lambda b, h: (b, 0, 0)),     # q_feat
                    wspec((A, Cv)),                                       # Wv
                    wspec((G, A)),                                        # Wg
                    wspec((G, 1)),                                        # bg
                ],
                out_specs=pl.BlockSpec((NB, G, thw), lambda b, h: (b, 0, h)),
            ),
            compiler_params=pltpu.CompilerParams(
                # Both grid axes independent -> megacore-shardable on v7x.
                dimension_semantics=("parallel", "parallel"),
                vmem_limit_bytes=vmem_limit),
            cost_estimate=cost,
        )(v_flat, q_feat, w_v_k, w_g, b_g_col)
        return jax.block_until_ready(out)

    try:
        out = run(1)
    except Exception:
        # Fallback for environments without single-buffer pipeline_mode support.
        out = run(2)

    # (N, G, HW) -> (N, G, H, W): free reshape, already NCHW.
    return out.reshape(N, G, H, W)


def attention_reference(v_nchw, q, w_v, w_q, b_q, w_g, b_g):
    """Pure-JAX reference mirroring the PyTorch forward (dropout = identity)."""
    v_feat = jnp.einsum('ac,nchw->nahw', w_v, v_nchw.astype(jnp.float32))
    q_feat = q @ w_q.T + b_q                                   # (N, A)
    vq = jnp.maximum(v_feat + q_feat[:, :, None, None], 0.0)
    g = jnp.einsum('ga,nahw->nghw', w_g, vq) + b_g[None, :, None, None]
    return g


if __name__ == "__main__":
    # Small shapes consistent with the module's forward.
    N, Cv, H, W = 2, 4, 16, 16          # image feature maps (NCHW)
    Q = 32                              # question_features
    A = 32                              # attention_features
    G = 2                               # glimpses
    # TODO(synk): nn.Dropout is identity at inference; the drop prob is ignored.

    key = jax.random.PRNGKey(0)
    kv, kq, kwv, kwq, kbq, kwg, kbg = jax.random.split(key, 7)

    v = jax.random.normal(kv, (N, Cv, H, W), dtype=jnp.float32)
    q = jax.random.normal(kq, (N, Q), dtype=jnp.float32)

    # Parameters in PyTorch layouts (1x1 conv kernels squeezed):
    #   v_conv.weight (A, Cv, 1, 1) -> (A, Cv), no bias
    #   q_linear.weight (A, Q), bias (A,)
    #   glimpses_conv.weight (G, A, 1, 1) -> (G, A), bias (G,)
    w_v = jax.random.normal(kwv, (A, Cv), dtype=jnp.float32) * 0.1
    w_q = jax.random.normal(kwq, (A, Q), dtype=jnp.float32) * 0.1
    b_q = jax.random.normal(kbq, (A,), dtype=jnp.float32) * 0.1
    w_g = jax.random.normal(kwg, (G, A), dtype=jnp.float32) * 0.1
    b_g = jax.random.normal(kbg, (G,), dtype=jnp.float32) * 0.1

    ref = attention_reference(v, q, w_v, w_q, b_q, w_g, b_g)

    # 1) f32 path.
    out = attention_forward(v, q, w_v, w_q, b_q, w_g, b_g)
    out = jax.block_until_ready(out)
    assert out.shape == (N, G, H, W), out.shape
    assert jnp.allclose(out, ref, atol=1e-4, rtol=1e-4), "f32 mismatch vs reference"

    # 2) v arrives in bf16 from its upstream producer (no wrapper-side recast of
    #    v inside attention_forward); bf16 output halves the write stream.
    v_bf16 = v.astype(jnp.bfloat16)
    out_bf = attention_forward(v_bf16, q, w_v, w_q, b_q, w_g, b_g,
                               out_dtype=jnp.bfloat16)
    out_bf = jax.block_until_ready(out_bf)
    assert out_bf.dtype == jnp.bfloat16
    assert jnp.allclose(out_bf.astype(jnp.float32), ref, atol=5e-2, rtol=5e-2), \
        "bf16 mismatch vs reference"

    # 3) Small spatial extent + larger batch: exercises batch-blocking (NB > 1)
    #    and an HW tile equal to the full (sub-128-lane) spatial extent.
    N2, H2, W2 = 8, 8, 8
    kv2, kq2 = jax.random.split(jax.random.PRNGKey(1), 2)
    v2 = jax.random.normal(kv2, (N2, Cv, H2, W2), dtype=jnp.float32)
    q2 = jax.random.normal(kq2, (N2, Q), dtype=jnp.float32)
    ref2 = attention_reference(v2, q2, w_v, w_q, b_q, w_g, b_g)
    out2 = attention_forward(v2, q2, w_v, w_q, b_q, w_g, b_g)
    out2 = jax.block_until_ready(out2)
    assert jnp.allclose(out2, ref2, atol=1e-4, rtol=1e-4), "batched-block mismatch"

    print("KERNEL_OK")
</pallas_src>

<mosaic_0001>
module attributes {stable_mosaic.version = 11 : i64} {
  func.func @attention_kernel(%arg0: i32, %arg1: i32, %arg2: memref<1x4x256xf32, #tpu.memory_space<vmem>>, %arg3: memref<1x32x1xf32, #tpu.memory_space<vmem>>, %arg4: memref<32x4xf32, #tpu.memory_space<vmem>>, %arg5: memref<2x32xf32, #tpu.memory_space<vmem>>, %arg6: memref<2x1xf32, #tpu.memory_space<vmem>>, %arg7: memref<1x2x256xf32, #tpu.memory_space<vmem>>) attributes {dimension_semantics = [#tpu.dimension_semantics<parallel>, #tpu.dimension_semantics<parallel>], iteration_bounds = array<i64: 2, 1>, scalar_prefetch = 0 : i64, scratch_operands = 0 : i64, tpu.core_type = #tpu.core_type<tc>, window_params = [{transform_indices = @transform_0, window_bounds = array<i64: 1, 4, 256>}, {transform_indices = @transform_1, window_bounds = array<i64: 1, 32, 1>}, {pipeline_mode = #tpu.pipeline_mode<synchronous>, transform_indices = @transform_2, window_bounds = array<i64: 32, 4>}, {pipeline_mode = #tpu.pipeline_mode<synchronous>, transform_indices = @transform_3, window_bounds = array<i64: 2, 32>}, {pipeline_mode = #tpu.pipeline_mode<synchronous>, transform_indices = @transform_4, window_bounds = array<i64: 2, 1>}, {transform_indices = @transform_5, window_bounds = array<i64: 1, 2, 256>}]} {
    %c0 = arith.constant 0 : index
    %c0_0 = arith.constant 0 : index
    %0 = vector.load %arg4[%c0, %c0_0] : memref<32x4xf32, #tpu.memory_space<vmem>>, vector<32x4xf32>
    %c0_1 = arith.constant 0 : index
    %c0_2 = arith.constant 0 : index
    %1 = vector.load %arg5[%c0_1, %c0_2] : memref<2x32xf32, #tpu.memory_space<vmem>>, vector<2x32xf32>
    %c0_3 = arith.constant 0 : index
    %c0_4 = arith.constant 0 : index
    %2 = vector.load %arg6[%c0_3, %c0_4] : memref<2x1xf32, #tpu.memory_space<vmem>>, vector<2x1xf32>
    %c0_5 = arith.constant 0 : index
    %c0_6 = arith.constant 0 : index
    %c0_7 = arith.constant 0 : index
    %3 = vector.load %arg2[%c0_5, %c0_6, %c0_7] : memref<1x4x256xf32, #tpu.memory_space<vmem>>, vector<1x4x256xf32>
    %4 = vector.shape_cast %3 : vector<1x4x256xf32> to vector<4x256xf32>
    %cst = arith.constant dense<0.000000e+00> : vector<32x256xf32>
    %5 = tpu.matmul %0, %4, %cst {dimension_numbers = #tpu.dot_dimension_numbers<[1], [0], [0], [1], [0, 0, 1, 1], [], []>} : vector<32x4xf32>, vector<4x256xf32>, vector<32x256xf32> -> vector<32x256xf32>
    %c0_8 = arith.constant 0 : index
    %c0_9 = arith.constant 0 : index
    %c0_10 = arith.constant 0 : index
    %6 = vector.load %arg3[%c0_8, %c0_9, %c0_10] : memref<1x32x1xf32, #tpu.memory_space<vmem>>, vector<1x32x1xf32>
    %7 = vector.shape_cast %6 : vector<1x32x1xf32> to vector<32x1xf32>
    %8 = vector.broadcast %7 : vector<32x1xf32> to vector<32x256xf32>
    %9 = arith.addf %5, %8 : vector<32x256xf32>
    %cst_11 = arith.constant 0.000000e+00 : f32
    %10 = vector.broadcast %cst_11 : f32 to vector<32x256xf32>
    %11 = arith.maximumf %9, %10 : vector<32x256xf32>
    %cst_12 = arith.constant dense<0.000000e+00> : vector<2x256xf32>
    %12 = tpu.matmul %1, %11, %cst_12 {dimension_numbers = #tpu.dot_dimension_numbers<[1], [0], [0], [1], [0, 0, 1, 1], [], []>} : vector<2x32xf32>, vector<32x256xf32>, vector<2x256xf32> -> vector<2x256xf32>
    %13 = vector.broadcast %2 : vector<2x1xf32> to vector<2x256xf32>
    %14 = arith.addf %12, %13 : vector<2x256xf32>
    %c0_13 = arith.constant 0 : index
    %c0_14 = arith.constant 0 : index
    %c0_15 = arith.constant 0 : index
    %15 = vector.load %arg7[%c0_13, %c0_14, %c0_15] : memref<1x2x256xf32, #tpu.memory_space<vmem>>, vector<1x2x256xf32>
    %16 = vector.shape_cast %15 : vector<1x2x256xf32> to vector<2x256xf32>
    %17 = vector.shape_cast %14 : vector<2x256xf32> to vector<1x2x256xf32>
    tpu.vector_store %arg7[%c0_13, %c0_14, %c0_15], %17 {strides = array<i32>} : memref<1x2x256xf32, #tpu.memory_space<vmem>>, vector<1x2x256xf32>,
    return
  }
  func.func @transform_0(%arg0: i32, %arg1: i32) -> (i32, i32, i32) {
    %c0_i32 = arith.constant 0 : i32
    %c0_i32_0 = arith.constant 0 : i32
    return %arg0, %c0_i32, %arg1 : i32, i32, i32
  }
  func.func @transform_1(%arg0: i32, %arg1: i32) -> (i32, i32, i32) {
    %c0_i32 = arith.constant 0 : i32
    %c0_i32_0 = arith.constant 0 : i32
    %c0_i32_1 = arith.constant 0 : i32
    return %arg0, %c0_i32, %c0_i32_0 : i32, i32, i32
  }
  func.func @transform_2(%arg0: i32, %arg1: i32) -> (i32, i32) {
    %c0_i32 = arith.constant 0 : i32
    %c0_i32_0 = arith.constant 0 : i32
    %c0_i32_1 = arith.constant 0 : i32
    return %c0_i32, %c0_i32_0 : i32, i32
  }
  func.func @transform_3(%arg0: i32, %arg1: i32) -> (i32, i32) {
    %c0_i32 = arith.constant 0 : i32
    %c0_i32_0 = arith.constant 0 : i32
    %c0_i32_1 = arith.constant 0 : i32
    return %c0_i32, %c0_i32_0 : i32, i32
  }
  func.func @transform_4(%arg0: i32, %arg1: i32) -> (i32, i32) {
    %c0_i32 = arith.constant 0 : i32
    %c0_i32_0 = arith.constant 0 : i32
    %c0_i32_1 = arith.constant 0 : i32
    return %c0_i32, %c0_i32_0 : i32, i32
  }
  func.func @transform_5(%arg0: i32, %arg1: i32) -> (i32, i32, i32) {
    %c0_i32 = arith.constant 0 : i32
    %c0_i32_0 = arith.constant 0 : i32
    return %arg0, %c0_i32, %arg1 : i32, i32, i32
  }
}

module attributes {stable_mosaic.version = 11 : i64} {
  func.func @attention_kernel(%arg0: i32, %arg1: i32, %arg2: memref<1x4x256xf32, #tpu.memory_space<vmem>>, %arg3: memref<1x32x1xf32, #tpu.memory_space<vmem>>, %arg4: memref<32x4xf32, #tpu.memory_space<vmem>>, %arg5: memref<2x32xf32, #tpu.memory_space<vmem>>, %arg6: memref<2x1xf32, #tpu.memory_space<vmem>>, %arg7: memref<1x2x256xf32, #tpu.memory_space<vmem>>) attributes {dimension_semantics = [#tpu.dimension_semantics<parallel>, #tpu.dimension_semantics<parallel>], iteration_bounds = array<i64: 2, 1>, scalar_prefetch = 0 : i64, scratch_operands = 0 : i64, tpu.core_type = #tpu.core_type<tc>, window_params = [{transform_indices = @transform_0, window_bounds = array<i64: 1, 4, 256>}, {transform_indices = @transform_1, window_bounds = array<i64: 1, 32, 1>}, {pipeline_mode = #tpu.pipeline_mode<synchronous>, transform_indices = @transform_2, window_bounds = array<i64: 32, 4>}, {pipeline_mode = #tpu.pipeline_mode<synchronous>, transform_indices = @transform_3, window_bounds = array<i64: 2, 32>}, {pipeline_mode = #tpu.pipeline_mode<synchronous>, transform_indices = @transform_4, window_bounds = array<i64: 2, 1>}, {transform_indices = @transform_5, window_bounds = array<i64: 1, 2, 256>}]} {
    %c0 = arith.constant 0 : index
    %c0_0 = arith.constant 0 : index
    %0 = vector.load %arg4[%c0, %c0_0] : memref<32x4xf32, #tpu.memory_space<vmem>>, vector<32x4xf32>
    %c0_1 = arith.constant 0 : index
    %c0_2 = arith.constant 0 : index
    %1 = vector.load %arg5[%c0_1, %c0_2] : memref<2x32xf32, #tpu.memory_space<vmem>>, vector<2x32xf32>
    %c0_3 = arith.constant 0 : index
    %c0_4 = arith.constant 0 : index
    %2 = vector.load %arg6[%c0_3, %c0_4] : memref<2x1xf32, #tpu.memory_space<vmem>>, vector<2x1xf32>
    %c0_5 = arith.constant 0 : index
    %c0_6 = arith.constant 0 : index
    %c0_7 = arith.constant 0 : index
    %3 = vector.load %arg2[%c0_5, %c0_6, %c0_7] : memref<1x4x256xf32, #tpu.memory_space<vmem>>, vector<1x4x256xf32>
    %4 = vector.shape_cast %3 : vector<1x4x256xf32> to vector<4x256xf32>
    %cst = arith.constant dense<0.000000e+00> : vector<32x256xf32>
    %5 = tpu.matmul %0, %4, %cst {dimension_numbers = #tpu.dot_dimension_numbers<[1], [0], [0], [1], [0, 0, 1, 1], [], []>} : vector<32x4xf32>, vector<4x256xf32>, vector<32x256xf32> -> vector<32x256xf32>
    %c0_8 = arith.constant 0 : index
    %c0_9 = arith.constant 0 : index
    %c0_10 = arith.constant 0 : index
    %6 = vector.load %arg3[%c0_8, %c0_9, %c0_10] : memref<1x32x1xf32, #tpu.memory_space<vmem>>, vector<1x32x1xf32>
    %7 = vector.shape_cast %6 : vector<1x32x1xf32> to vector<32x1xf32>
    %8 = vector.broadcast %7 : vector<32x1xf32> to vector<32x256xf32>
    %9 = arith.addf %5, %8 : vector<32x256xf32>
    %cst_11 = arith.constant 0.000000e+00 : f32
    %10 = vector.broadcast %cst_11 : f32 to vector<32x256xf32>
    %11 = arith.maximumf %9, %10 : vector<32x256xf32>
    %cst_12 = arith.constant dense<0.000000e+00> : vector<2x256xf32>
    %12 = tpu.matmul %1, %11, %cst_12 {dimension_numbers = #tpu.dot_dimension_numbers<[1], [0], [0], [1], [0, 0, 1, 1], [], []>} : vector<2x32xf32>, vector<32x256xf32>, vector<2x256xf32> -> vector<2x256xf32>
    %13 = vector.broadcast %2 : vector<2x1xf32> to vector<2x256xf32>
    %14 = arith.addf %12, %13 : vector<2x256xf32>
    %c0_13 = arith.constant 0 : index
    %c0_14 = arith.constant 0 : index
    %c0_15 = arith.constant 0 : index
    %15 = vector.load %arg7[%c0_13, %c0_14, %c0_15] : memref<1x2x256xf32, #tpu.memory_space<vmem>>, vector<1x2x256xf32>
    %16 = vector.shape_cast %15 : vector<1x2x256xf32> to vector<2x256xf32>
    %17 = vector.shape_cast %14 : vector<2x256xf32> to vector<1x2x256xf32>
    tpu.vector_store %arg7[%c0_13, %c0_14, %c0_15], %17 {strides = array<i32>} : memref<1x2x256xf32, #tpu.memory_space<vmem>>, vector<1x2x256xf32>,
    return
  }
  func.func @transform_0(%arg0: i32, %arg1: i32) -> (i32, i32, i32) {
    %c0_i32 = arith.constant 0 : i32
    %c0_i32_0 = arith.constant 0 : i32
    return %arg0, %c0_i32, %arg1 : i32, i32, i32
  }
  func.func @transform_1(%arg0: i32, %arg1: i32) -> (i32, i32, i32) {
    %c0_i32 = arith.constant 0 : i32
    %c0_i32_0 = arith.constant 0 : i32
    %c0_i32_1 = arith.constant 0 : i32
    return %arg0, %c0_i32, %c0_i32_0 : i32, i32, i32
  }
  func.func @transform_2(%arg0: i32, %arg1: i32) -> (i32, i32) {
    %c0_i32 = arith.constant 0 : i32
    %c0_i32_0 = arith.constant 0 : i32
    %c0_i32_1 = arith.constant 0 : i32
    return %c0_i32, %c0_i32_0 : i32, i32
  }
  func.func @transform_3(%arg0: i32, %arg1: i32) -> (i32, i32) {
    %c0_i32 = arith.constant 0 : i32
    %c0_i32_0 = arith.constant 0 : i32
    %c0_i32_1 = arith.constant 0 : i32
    return %c0_i32, %c0_i32_0 : i32, i32
  }
  func.func @transform_4(%arg0: i32, %arg1: i32) -> (i32, i32) {
    %c0_i32 = arith.constant 0 : i32
    %c0_i32_0 = arith.constant 0 : i32
    %c0_i32_1 = arith.constant 0 : i32
    return %c0_i32, %c0_i32_0 : i32, i32
  }
  func.func @transform_5(%arg0: i32, %arg1: i32) -> (i32, i32, i32) {
    %c0_i32 = arith.constant 0 : i32
    %c0_i32_0 = arith.constant 0 : i32
    return %arg0, %c0_i32, %arg1 : i32, i32, i32
  }
}

</mosaic_0001>

<llo_original>
// kernel: tpu_custom_call.1
$region0: #{tpu_custom_call.1}
  #allocation0 [shape = 'u32[]', space=smem, size = 0x4, offset = 0x4, fixed_abs, tag = 'smem constant byte address 0x4 - core index']
  #allocation1 [shape = 'u32[72,128]{1,0:T(1,128)}', space=vmem, size = 0x9000, scoped, tag = 'internal scratch']
  %s0 = inlined_call_operand.vmem [shape: f32[2,4,256], index: 0, kind: input, shape index: {}]
  %s1 = inlined_call_operand.vmem [shape: f32[2,32,1], index: 1, kind: input, shape index: {}]
  %s2 = inlined_call_operand.vmem [shape: f32[32,4], index: 2, kind: input, shape index: {}]
  %s3 = inlined_call_operand.vmem [shape: f32[2,32], index: 3, kind: input, shape index: {}]
  %s4 = inlined_call_operand.vmem [shape: f32[2,1], index: 4, kind: input, shape index: {}]
  %s5 = inlined_call_operand.hbm [shape: f32[2,2,256], index: 5, kind: output, shape index: {}]
  %s6 = sld [smem:[#allocation0]]
  $region53: #{tpu_custom_call.1} parent=0
    _
  %s8 = ssub.s32 1, %s6
  %s9 = scalar_select 0, %s8, %s6
  $region1: #{tpu_custom_call.1} parent=0
    #allocation2 [shape = 'u8[4096]{0}', space=vmem, size = 0x1000, scoped, tag = 'output window, operand 0']
    #allocation3 [shape = 's32[2]{0}', space=sflag, size = 0x8, scoped, tag = 'scoped memory for tpu_custom_call.1']
    %10 = vsyncpa [#allocation3], 0
    %s11 = scalar_lea.sflag [#allocation3], 1
    %12 = vsyncpa %s11, 0
    loop: start=0, step=1, limit=4
    $region2: #{tpu_custom_call.1} parent=1 // loop_pre_header
      _
    $region3: #{tpu_custom_call.1} parent=1 // loop_header
      %s14 = sphi 0, %s18
      %p15 = scmp.ge.s32.totalorder %s14, 4
      %s21 = sphi 0, %s33
      %s22 = sphi 0, %s29
      %s23 = sphi 0, %s21
      %s24 = sphi 0, %s22
      %s25 = sphi 0, %s23
      %s26 = sphi 0, %s24
      %s38 = sphi 0, %s40
      %s41 = sphi 0, %s38
      %s42 = sphi 0, %s41
      %s58 = sphi 0, %s42
      %s64 = sphi 0, %s66
      %s67 = sphi 0, %s64
      %s68 = sphi 0, %s67
      %s84 = sphi 0, %s68
      %s88 = sphi 0, %s88
      %s90 = sphi 0, %s88
      %s91 = sphi 0, %s90
      %s105 = sphi 0, %s91
      %s109 = sphi 0, %s109
      %s111 = sphi 0, %s109
      %s112 = sphi 0, %s111
      %s126 = sphi 0, %s112
      %s130 = sphi 0, %s130
      %s132 = sphi 0, %s130
      %s133 = sphi 0, %s132
      %s147 = sphi 0, %s133
      %s155 = sphi 0, %s157
      %s158 = sphi 0, %s155
      %s159 = sphi 0, %s158
      %s175 = sphi 0, %s159
    $region4: #{tpu_custom_call.1} parent=1 // loop_header_branch
      %17 = sbr.rel (%p15) target = $region8
    $region5: #{tpu_custom_call.1} parent=1 // loop_body
      %s19 = ssub.s32 %s14, 1
      %s20 = ssub.s32 %s14, 2
      %s27 = sadd.s32 1, %s22
      %p28 = scmp.ge.s32.totalorder %s27, 1
      %s29 = scalar_select %p28, 0, %s27
      %s30 = sadd.s32 1, %s21
      %s31 = scalar_select %p28, %s30, %s21
      %p32 = scmp.ge.s32.totalorder %s31, 2
      %s33 = scalar_select %p32, 0, %s31
      %s34 = ssub.s32 %s21, %s33
      %s35 = ssub.s32 %s22, %s29
      %s36 = sor.u32 %s34, %s35
      %p37 = scmp.eq.s32.totalorder %s36, 0
      %s39 = sadd.s32 %s38, 1
      %s40 = scalar_select %p37, %s38, %s39
      %p43 = pneg %p37
      %p44 = scmp.eq.s32.totalorder %s14, 1
      %p45 = por %p43, %p44
      %p46 = scmp.ne.s32.totalorder %s38, %s41
      %p47 = scmp.eq.s32.totalorder %s14, 0
      %p48 = por %p46, %p47
      %p49 = scmp.ne.s32.totalorder %s38, %s41
      %p50 = scmp.eq.s32.totalorder %s19, 1
      %p51 = por %p49, %p50
      %p52 = scmp.ne.s32.totalorder %s41, %s42
      %p53 = scmp.eq.s32.totalorder %s19, 0
      %p54 = por %p52, %p53
      %p55 = scmp.ne.s32.totalorder %s41, %s42
      %p56 = scmp.eq.s32.totalorder %s20, 1
      %p57 = por %p55, %p56
      %p59 = scmp.ne.s32.totalorder %s42, %s58
      %p60 = scmp.eq.s32.totalorder %s20, 0
      %p61 = por %p59, %p60
      %s62 = ssub.s32 %s21, %s33
      %p63 = scmp.eq.s32.totalorder %s62, 0
      %s65 = sadd.s32 %s64, 1
      %s66 = scalar_select %p63, %s64, %s65
      %p69 = pneg %p63
      %p70 = scmp.eq.s32.totalorder %s14, 1
      %p71 = por %p69, %p70
      %p72 = scmp.ne.s32.totalorder %s64, %s67
      %p73 = scmp.eq.s32.totalorder %s14, 0
      %p74 = por %p72, %p73
      %p75 = scmp.ne.s32.totalorder %s64, %s67
      %p76 = scmp.eq.s32.totalorder %s19, 1
      %p77 = por %p75, %p76
      %p78 = scmp.ne.s32.totalorder %s67, %s68
      %p79 = scmp.eq.s32.totalorder %s19, 0
      %p80 = por %p78, %p79
      %p81 = scmp.ne.s32.totalorder %s67, %s68
      %p82 = scmp.eq.s32.totalorder %s20, 1
      %p83 = por %p81, %p82
      %p85 = scmp.ne.s32.totalorder %s68, %s84
      %p86 = scmp.eq.s32.totalorder %s20, 0
      %p87 = por %p85, %p86
      %s89 = sadd.s32 %s88, 1
      %p92 = scmp.eq.s32.totalorder %s14, 1
      %p93 = scmp.ne.s32.totalorder %s88, %s90
      %p94 = scmp.eq.s32.totalorder %s14, 0
      %p95 = por %p93, %p94
      %p96 = scmp.ne.s32.totalorder %s88, %s90
      %p97 = scmp.eq.s32.totalorder %s19, 1
      %p98 = por %p96, %p97
      %p99 = scmp.ne.s32.totalorder %s90, %s91
      %p100 = scmp.eq.s32.totalorder %s19, 0
      %p101 = por %p99, %p100
      %p102 = scmp.ne.s32.totalorder %s90, %s91
      %p103 = scmp.eq.s32.totalorder %s20, 1
      %p104 = por %p102, %p103
      %p106 = scmp.ne.s32.totalorder %s91, %s105
      %p107 = scmp.eq.s32.totalorder %s20, 0
      %p108 = por %p106, %p107
      %s110 = sadd.s32 %s109, 1
      %p113 = scmp.eq.s32.totalorder %s14, 1
      %p114 = scmp.ne.s32.totalorder %s109, %s111
      %p115 = scmp.eq.s32.totalorder %s14, 0
      %p116 = por %p114, %p115
      %p117 = scmp.ne.s32.totalorder %s109, %s111
      %p118 = scmp.eq.s32.totalorder %s19, 1
      %p119 = por %p117, %p118
      %p120 = scmp.ne.s32.totalorder %s111, %s112
      %p121 = scmp.eq.s32.totalorder %s19, 0
      %p122 = por %p120, %p121
      %p123 = scmp.ne.s32.totalorder %s111, %s112
      %p124 = scmp.eq.s32.totalorder %s20, 1
      %p125 = por %p123, %p124
      %p127 = scmp.ne.s32.totalorder %s112, %s126
      %p128 = scmp.eq.s32.totalorder %s20, 0
      %p129 = por %p127, %p128
      %s131 = sadd.s32 %s130, 1
      %p134 = scmp.eq.s32.totalorder %s14, 1
      %p135 = scmp.ne.s32.totalorder %s130, %s132
      %p136 = scmp.eq.s32.totalorder %s14, 0
      %p137 = por %p135, %p136
      %p138 = scmp.ne.s32.totalorder %s130, %s132
      %p139 = scmp.eq.s32.totalorder %s19, 1
      %p140 = por %p138, %p139
      %p141 = scmp.ne.s32.totalorder %s132, %s133
      %p142 = scmp.eq.s32.totalorder %s19, 0
      %p143 = por %p141, %p142
      %p144 = scmp.ne.s32.totalorder %s132, %s133
      %p145 = scmp.eq.s32.totalorder %s20, 1
      %p146 = por %p144, %p145
      %p148 = scmp.ne.s32.totalorder %s133, %s147
      %p149 = scmp.eq.s32.totalorder %s20, 0
      %p150 = por %p148, %p149
      %s151 = ssub.s32 %s21, %s33
      %s152 = ssub.s32 %s22, %s29
      %s153 = sor.u32 %s151, %s152
      %p154 = scmp.eq.s32.totalorder %s153, 0
      %s156 = sadd.s32 %s155, 1
      %s157 = scalar_select %p154, %s155, %s156
      %p160 = pneg %p154
      %p161 = scmp.eq.s32.totalorder %s14, 1
      %p162 = por %p160, %p161
      %p163 = scmp.ne.s32.totalorder %s155, %s158
      %p164 = scmp.eq.s32.totalorder %s14, 0
      %p165 = por %p163, %p164
      %p166 = scmp.ne.s32.totalorder %s155, %s158
      %p167 = scmp.eq.s32.totalorder %s19, 1
      %p168 = por %p166, %p167
      %p169 = scmp.ne.s32.totalorder %s158, %s159
      %p170 = scmp.eq.s32.totalorder %s19, 0
      %p171 = por %p169, %p170
      %p172 = scmp.ne.s32.totalorder %s158, %s159
      %p173 = scmp.eq.s32.totalorder %s20, 1
      %p174 = por %p172, %p173
      %p176 = scmp.ne.s32.totalorder %s159, %s175
      %p177 = scmp.eq.s32.totalorder %s20, 0
      %p178 = por %p176, %p177
      %p179 = scmp.le.s32.totalorder 1, %s14
      %p180 = scmp.lt.s32.totalorder %s14, 3
      %p181 = pnand %p179, %p180
      %p182 = pneg %p181
      // Predicated region
      $region9: #{tpu_custom_call.1} parent=5 // pred_check
        _
      $region10: #{tpu_custom_call.1} parent=5 // pred_check_branch
        %184 = sbr.rel (%p181) target = $region12
      $region11: #{tpu_custom_call.1} parent=5 // pred_region
        %s185 = ssub.s32 %s14, 1
        // Predicated region
        $region13: #{tpu_custom_call.1} parent=11 // pred_check
          %p186 = pneg %p101
        $region14: #{tpu_custom_call.1} parent=11 // pred_check_branch
          %188 = sbr.rel (%p186) target = $region16
        $region15: #{tpu_custom_call.1} parent=11 // pred_region
          _
        $region16: #{tpu_custom_call.1} parent=11 // pred_fallthru
          _
        // Predicated region
        $region17: #{tpu_custom_call.1} parent=11 // pred_check
          %p189 = pneg %p122
        $region18: #{tpu_custom_call.1} parent=11 // pred_check_branch
          %191 = sbr.rel (%p189) target = $region20
        $region19: #{tpu_custom_call.1} parent=11 // pred_region
          _
        $region20: #{tpu_custom_call.1} parent=11 // pred_fallthru
          _
        // Predicated region
        $region21: #{tpu_custom_call.1} parent=11 // pred_check
          %p192 = pneg %p143
        $region22: #{tpu_custom_call.1} parent=11 // pred_check_branch
          %194 = sbr.rel (%p192) target = $region24
        $region23: #{tpu_custom_call.1} parent=11 // pred_region
          _
        $region24: #{tpu_custom_call.1} parent=11 // pred_fallthru
          _
      $region12: #{tpu_custom_call.1} parent=5 // pred_fallthru
        _
      %p195 = scmp.lt.s32.totalorder %s14, 2
      // Predicated region
      $region25: #{tpu_custom_call.1} parent=5 // pred_check
        %p196 = pneg %p195
      $region26: #{tpu_custom_call.1} parent=5 // pred_check_branch
        %198 = sbr.rel (%p196) target = $region28
      $region27: #{tpu_custom_call.1} parent=5 // pred_region
        // Predicated region
        $region29: #{tpu_custom_call.1} parent=27 // pred_check
          %p199 = pneg %p48
        $region30: #{tpu_custom_call.1} parent=27 // pred_check_branch
          %201 = sbr.rel (%p199) target = $region32
        $region31: #{tpu_custom_call.1} parent=27 // pred_region
          %s202 = smul.u32 2, %s22
          %p203 = scmp.lt.s32.totalorder %s21, 1
          %s204 = scalar_select %p203, %s21, 1
          %p205 = scmp.lt.s32.totalorder %s202, 1
          %s206 = scalar_select %p205, %s202, 1
          %s207 = smul.addr %s204, 2
          %s208 = sadd.s32 %s206, %s207
          %s209 = smul.addr %s208, 4
          %s210 = scalar_lea.vmem %s0, %s209
          %s211 = smul.u32 2, %s22
        $region32: #{tpu_custom_call.1} parent=27 // pred_fallthru
          _
        // Predicated region
        $region33: #{tpu_custom_call.1} parent=27 // pred_check
          %p212 = pneg %p74
        $region34: #{tpu_custom_call.1} parent=27 // pred_check_branch
          %214 = sbr.rel (%p212) target = $region36
        $region35: #{tpu_custom_call.1} parent=27 // pred_region
          %p215 = scmp.lt.s32.totalorder %s21, 1
          %s216 = scalar_select %p215, %s21, 1
          %s217 = smul.addr %s216, 4
          %s218 = smul.addr %s217, 8
          %s219 = scalar_lea.vmem %s1, %s218
        $region36: #{tpu_custom_call.1} parent=27 // pred_fallthru
          _
      $region28: #{tpu_custom_call.1} parent=5 // pred_fallthru
        _
      %p220 = scmp.le.s32.totalorder 1, %s14
      %p221 = scmp.lt.s32.totalorder %s14, 3
      %p222 = pnand %p220, %p221
      %p223 = pneg %p222
      // Predicated region
      $region37: #{tpu_custom_call.1} parent=5 // pred_check
        _
      $region38: #{tpu_custom_call.1} parent=5 // pred_check_branch
        %225 = sbr.rel (%p222) target = $region40
      $region39: #{tpu_custom_call.1} parent=5 // pred_region
        %s226 = ssub.s32 %s14, 1
        %s227 = smul.u32 2, %s24
        %p228 = scmp.lt.s32.totalorder %s23, 1
        %s229 = scalar_select %p228, %s23, 1
        %p230 = scmp.lt.s32.totalorder %s227, 1
        %s231 = scalar_select %p230, %s227, 1
        %s232 = smul.addr %s229, 2
        %s233 = sadd.s32 %s231, %s232
        %s234 = smul.addr %s233, 4
        %s235 = scalar_lea.vmem %s0, %s234
        %p236 = pneg %p54
        %p237 = pneg %p51
        %p238 = scmp.lt.s32.totalorder %s23, 1
        %s239 = scalar_select %p238, %s23, 1
        %s240 = smul.addr %s239, 4
        %s241 = smul.addr %s240, 8
        %s242 = scalar_lea.vmem %s1, %s241
        %p243 = pneg %p80
        %p244 = pneg %p77
        %p245 = pneg %p101
        %p246 = pneg %p98
        %p247 = pneg %p122
        %p248 = pneg %p119
        %p249 = pneg %p143
        %p250 = pneg %p140
        %p251 = pneg %p171
        %p252 = pneg %p168
        %s253 = sand.u32 %s158, 1
        %s254 = scalar_lea.sflag [#allocation3], %s253
        %s255 = sand.u32 %s158, 1
        %s256 = smul.addr %s255, 4
        %s257 = scalar_lea.vmem [#allocation2], %s256
        %s258 = smul.u32 2, %s24
        %p259 = scmp.lt.s32.totalorder %s23, 1
        %s260 = scalar_select %p259, %s23, 1
        %p261 = scmp.lt.s32.totalorder %s258, 1
        %s262 = scalar_select %p261, %s258, 1
        %s263 = smul.addr %s260, 2
        %s264 = sadd.s32 %s262, %s263
        %s265 = smul.addr %s264, 4
        %s266 = scalar_lea.vmem %s0, %s265
        %s267 = smul.u32 2, %s24
        %p268 = scmp.lt.s32.totalorder %s23, 1
        %s269 = scalar_select %p268, %s23, 1
        %s270 = smul.addr %s269, 4
        %s271 = smul.addr %s270, 8
        %s272 = scalar_lea.vmem %s1, %s271
        %s273 = smul.u32 2, %s24
        %v274 = vld [vmem:[%s2] sm:$0xff]
        %v275 = vld [vmem:[%s2 + $0x8] sm:$0xff]
        %v276 = vld [vmem:[%s2 + $0x10] sm:$0xff]
        %v277 = vld [vmem:[%s2 + $0x18] sm:$0xff]
        %v278 = vld [vmem:[%s3] sm:$0x3]
        %v279 = vld [vmem:[%s4] sm:$0x3]
        %v280 = vld [vmem:[%s266] sm:$0xff]
        %v281 = vld [vmem:[%s272] sm:$0xff]
        %v282 = vld [vmem:[%s272 + $0x8] sm:$0xff]
        %v283 = vld [vmem:[%s272 + $0x10] sm:$0xff]
        %v284 = vld [vmem:[%s272 + $0x18] sm:$0xff]
        %286 = vset.pattern.permute.xlu0 0
        %287 = vperm.xlu0 %286, %v281
        %v288 = vpop.permute.xlu0 %287
        %291 = vset.pattern.permute.xlu0 0
        %292 = vperm.xlu0 %291, %v282
        %v293 = vpop.permute.xlu0 %292
        %296 = vset.pattern.permute.xlu0 0
        %297 = vperm.xlu0 %296, %v283
        %v298 = vpop.permute.xlu0 %297
        %301 = vset.pattern.permute.xlu0 0
        %302 = vperm.xlu0 %301, %v284
        %v303 = vpop.permute.xlu0 %302
        %306 = vst [vmem:[#allocation1] ss:$2 sm:$0xff] %v280
        %v307 = vld.sshfl [vmem:[#allocation1] sm:$0xff pattern:$0x75316420]
        %v308 = vld.sshfl [vmem:[#allocation1 + $0x8] sm:$0xff pattern:$0x75316420]
        %vm309 = vcmask 31744
        %v311 = vsel %vm309, %v274, 0
        %v314 = vsel %vm309, %v275, 0
        %v317 = vsel %vm309, %v276, 0
        %v320 = vsel %vm309, %v277, 0
        %vm322 = vcmask 1043456
        %v323 = vsel %vm322, %v307, 0
        %v325 = vsel %vm322, %v308, 0
        %327 = vmatpush.msra.mxu0 0.0
        %328 = vmatpush.msra.mxu0 0.0
        %329 = vmatpush.msra.mxu0 0.0
        %330 = vmatpush.msra.mxu0 0.0
        %331 = vmatpush.msra.mxu0 0.0
        %332 = vmatpush.msra.mxu0 0.0
        %333 = vmatpush.msra.mxu0 0.0
        %334 = vmatpush.msra.mxu0 0.0
        %335 = vmatpush.msra.mxu0 0.0
        %336 = vmatpush.msra.mxu0 0.0
        %337 = vmatpush.msra.mxu0 0.0
        %338 = vmatpush.msra.mxu0 0.0
        %339 = vmatpush.msra.mxu0 0.0
        %340 = vmatpush.msra.mxu0 0.0
        %341 = vmatpush.msra.mxu0 0.0
        %342 = vmatpush.msra.mxu0 %v323
        %343 = vmatmul.f32.gmra.mxu0 %v311
        %v344 = vpop.f32.mrf.mxu0
        %v345 = vadd.f32 %v288, %v344
        %346 = vmatmul.f32.gmra.mxu0 %v314
        %v347 = vpop.f32.mrf.mxu0
        %v348 = vadd.f32 %v293, %v347
        %349 = vmatmul.f32.gmra.mxu0 %v317
        %v350 = vpop.f32.mrf.mxu0
        %v351 = vadd.f32 %v298, %v350
        %352 = vmatmul.f32.gmra.mxu0 %v320
        %v353 = vpop.f32.mrf.mxu0
        %v354 = vadd.f32 %v303, %v353
        %355 = vdwg.mxu0
        %356 = vmatpush.msra.mxu0 0.0
        %357 = vmatpush.msra.mxu0 0.0
        %358 = vmatpush.msra.mxu0 0.0
        %359 = vmatpush.msra.mxu0 0.0
        %360 = vmatpush.msra.mxu0 0.0
        %361 = vmatpush.msra.mxu0 0.0
        %362 = vmatpush.msra.mxu0 0.0
        %363 = vmatpush.msra.mxu0 0.0
        %364 = vmatpush.msra.mxu0 0.0
        %365 = vmatpush.msra.mxu0 0.0
        %366 = vmatpush.msra.mxu0 0.0
        %367 = vmatpush.msra.mxu0 0.0
        %368 = vmatpush.msra.mxu0 0.0
        %369 = vmatpush.msra.mxu0 0.0
        %370 = vmatpush.msra.mxu0 0.0
        %371 = vmatpush.msra.mxu0 %v325
        %372 = vmatmul.f32.gmra.mxu0 %v311
        %v373 = vpop.f32.mrf.mxu0
        %v374 = vadd.f32 %v288, %v373
        %375 = vmatmul.f32.gmra.mxu0 %v314
        %v376 = vpop.f32.mrf.mxu0
        %v377 = vadd.f32 %v293, %v376
        %378 = vmatmul.f32.gmra.mxu0 %v317
        %v379 = vpop.f32.mrf.mxu0
        %v380 = vadd.f32 %v298, %v379
        %381 = vmatmul.f32.gmra.mxu0 %v320
        %v382 = vpop.f32.mrf.mxu0
        %v383 = vadd.f32 %v303, %v382
        %384 = vdwg.mxu0
        %v385 = vmax.f32 %v345, 0.0
        %v386 = vmax.f32 %v374, 0.0
        %v387 = vmax.f32 %v348, 0.0
        %v388 = vmax.f32 %v377, 0.0
        %v389 = vmax.f32 %v351, 0.0
        %v390 = vmax.f32 %v380, 0.0
        %v391 = vmax.f32 %v354, 0.0
        %v392 = vmax.f32 %v383, 0.0
        %394 = vset.pattern.permute.xlu0 0
        %395 = vperm.xlu0 %394, %v279
        %v396 = vpop.permute.xlu0 %395
        %vm398 = vcmask 261120
        %v400 = vsel %vm398, %v278, 0
        %402 = vmatpush.msra.mxu0 0.0
        %403 = vmatpush.msra.mxu0 0.0
        %404 = vmatpush.msra.mxu0 0.0
        %405 = vmatpush.msra.mxu0 0.0
        %406 = vmatpush.msra.mxu0 0.0
        %407 = vmatpush.msra.mxu0 0.0
        %408 = vmatpush.msra.mxu0 0.0
        %409 = vmatpush.msra.mxu0 0.0
        %410 = vmatpush.msra.mxu0 0.0
        %411 = vmatpush.msra.mxu0 0.0
        %412 = vmatpush.msra.mxu0 0.0
        %413 = vmatpush.msra.mxu0 0.0
        %414 = vmatpush.msra.mxu0 %v391
        %415 = vmatpush.msra.mxu0 %v389
        %416 = vmatpush.msra.mxu0 %v387
        %417 = vmatpush.msra.mxu0 %v385
        %418 = vmatmul.f32.gmra.mxu0 %v400
        %v419 = vpop.f32.mrf.mxu0
        %v420 = vadd.f32 %v396, %v419
        %421 = vdwg.mxu0
        %422 = vmatpush.msra.mxu0 0.0
        %423 = vmatpush.msra.mxu0 0.0
        %424 = vmatpush.msra.mxu0 0.0
        %425 = vmatpush.msra.mxu0 0.0
        %426 = vmatpush.msra.mxu0 0.0
        %427 = vmatpush.msra.mxu0 0.0
        %428 = vmatpush.msra.mxu0 0.0
        %429 = vmatpush.msra.mxu0 0.0
        %430 = vmatpush.msra.mxu0 0.0
        %431 = vmatpush.msra.mxu0 0.0
        %432 = vmatpush.msra.mxu0 0.0
        %433 = vmatpush.msra.mxu0 0.0
        %434 = vmatpush.msra.mxu0 %v392
        %435 = vmatpush.msra.mxu0 %v390
        %436 = vmatpush.msra.mxu0 %v388
        %437 = vmatpush.msra.mxu0 %v386
        %438 = vmatmul.f32.gmra.mxu0 %v400
        %v439 = vpop.f32.mrf.mxu0
        %v440 = vadd.f32 %v396, %v439
        %441 = vdwg.mxu0
        %v444 = vrot.slane %v440, 6
        %vm445 = vcmask 1041408
        %v446 = vsel %vm445, %v420, %v444
        %448 = vst [vmem:[%s257] sm:$0xf] %v446
        %s449 = sand.u32 %s158, 1
        %s450 = scalar_lea.sflag [#allocation3], %s449
        %s451 = sand.u32 %s158, 1
        %s452 = smul.addr %s451, 4
        %s453 = scalar_lea.vmem [#allocation2], %s452
        // Predicated region
        $region41: #{tpu_custom_call.1} parent=39 // pred_check
          %p454 = pneg %p168
        $region42: #{tpu_custom_call.1} parent=39 // pred_check_branch
          %456 = sbr.rel (%p454) target = $region44
        $region43: #{tpu_custom_call.1} parent=39 // pred_region
          %s457 = smul.u32 2, %s24
          %459 = vsyncadd %s450, 0
          %s460 = smul.addr %s23, 2
          %s461 = sadd.s32 %s457, %s460
          %s462 = smul.addr %s461, 2
          %s463 = scalar_lea.hbm %s5, %s462
          %s465 = sshll.u32 %s453, 4
          %s466 = int_to_ptr.vmem [resolvable:$true] %s465
          %s467 = sshll.u32 %s463, 4
          %s468 = int_to_ptr.hbm [resolvable:$true] %s467
          %470 = dma.vmem_to_hbm [thread:$0]  %s466, 64, %s468, %s450
        $region44: #{tpu_custom_call.1} parent=39 // pred_fallthru
          _
      $region40: #{tpu_custom_call.1} parent=5 // pred_fallthru
        _
      %p471 = scmp.le.s32.totalorder 2, %s14
      // Predicated region
      $region45: #{tpu_custom_call.1} parent=5 // pred_check
        %p472 = pneg %p471
      $region46: #{tpu_custom_call.1} parent=5 // pred_check_branch
        %474 = sbr.rel (%p472) target = $region48
      $region47: #{tpu_custom_call.1} parent=5 // pred_region
        %s475 = ssub.s32 %s14, 2
        // Predicated region
        $region49: #{tpu_custom_call.1} parent=47 // pred_check
          %p476 = pneg %p174
        $region50: #{tpu_custom_call.1} parent=47 // pred_check_branch
          %478 = sbr.rel (%p476) target = $region52
        $region51: #{tpu_custom_call.1} parent=47 // pred_region
          %s479 = sand.u32 %s159, 1
          %s480 = scalar_lea.sflag [#allocation3], %s479
          %s481 = sand.u32 %s159, 1
          %s482 = smul.addr %s481, 4
          %s483 = scalar_lea.vmem [#allocation2], %s482
          %485 = dma.done %s480, 64
        $region52: #{tpu_custom_call.1} parent=47 // pred_fallthru
          _
      $region48: #{tpu_custom_call.1} parent=5 // pred_fallthru
        _
    $region6: #{tpu_custom_call.1} parent=1 // loop_footer
      %s18 = sadd.s32 1, %s14
    $region7: #{tpu_custom_call.1} parent=1 // loop_footer_branch
      %13 = sbr.rel target = $region3
    $region8: #{tpu_custom_call.1} parent=1 // loop_exit
      _
    %486 = vsyncpa [#allocation3], 1
    %s487 = scalar_lea.sflag [#allocation3], 1
    %488 = vsyncpa %s487, 1

// kernel: tpu_custom_call.1
$region0: #{tpu_custom_call.1}
  #allocation0 [shape = 'u32[]', space=smem, size = 0x4, offset = 0x4, fixed_abs, tag = 'smem constant byte address 0x4 - core index']
  #allocation1 [shape = 'u32[72,128]{1,0:T(1,128)}', space=vmem, size = 0x9000, scoped, tag = 'internal scratch']
  %s0 = inlined_call_operand.vmem [shape: f32[2,4,256], index: 0, kind: input, shape index: {}]
  %s1 = inlined_call_operand.vmem [shape: f32[2,32,1], index: 1, kind: input, shape index: {}]
  %s2 = inlined_call_operand.vmem [shape: f32[32,4], index: 2, kind: input, shape index: {}]
  %s3 = inlined_call_operand.vmem [shape: f32[2,32], index: 3, kind: input, shape index: {}]
  %s4 = inlined_call_operand.vmem [shape: f32[2,1], index: 4, kind: input, shape index: {}]
  %s5 = inlined_call_operand.hbm [shape: f32[2,2,256], index: 5, kind: output, shape index: {}]
  %s6 = sld [smem:[#allocation0]]
  $region53: #{tpu_custom_call.1} parent=0
    _
  %s8 = ssub.s32 1, %s6
  %s9 = scalar_select 0, %s8, %s6
  $region1: #{tpu_custom_call.1} parent=0
    #allocation2 [shape = 'u8[4096]{0}', space=vmem, size = 0x1000, scoped, tag = 'output window, operand 0']
    #allocation3 [shape = 's32[2]{0}', space=sflag, size = 0x8, scoped, tag = 'scoped memory for tpu_custom_call.1']
    %10 = vsyncpa [#allocation3], 0
    %s11 = scalar_lea.sflag [#allocation3], 1
    %12 = vsyncpa %s11, 0
    loop: start=0, step=1, limit=4
    $region2: #{tpu_custom_call.1} parent=1 // loop_pre_header
      _
    $region3: #{tpu_custom_call.1} parent=1 // loop_header
      %s14 = sphi 0, %s18
      %p15 = scmp.ge.s32.totalorder %s14, 4
      %s21 = sphi 0, %s33
      %s22 = sphi 0, %s29
      %s23 = sphi 0, %s21
      %s24 = sphi 0, %s22
      %s25 = sphi 0, %s23
      %s26 = sphi 0, %s24
      %s38 = sphi 0, %s40
      %s41 = sphi 0, %s38
      %s42 = sphi 0, %s41
      %s58 = sphi 0, %s42
      %s64 = sphi 0, %s66
      %s67 = sphi 0, %s64
      %s68 = sphi 0, %s67
      %s84 = sphi 0, %s68
      %s88 = sphi 0, %s88
      %s90 = sphi 0, %s88
      %s91 = sphi 0, %s90
      %s105 = sphi 0, %s91
      %s109 = sphi 0, %s109
      %s111 = sphi 0, %s109
      %s112 = sphi 0, %s111
      %s126 = sphi 0, %s112
      %s130 = sphi 0, %s130
      %s132 = sphi 0, %s130
      %s133 = sphi 0, %s132
      %s147 = sphi 0, %s133
      %s155 = sphi 0, %s157
      %s158 = sphi 0, %s155
      %s159 = sphi 0, %s158
      %s175 = sphi 0, %s159
    $region4: #{tpu_custom_call.1} parent=1 // loop_header_branch
      %17 = sbr.rel (%p15) target = $region8
    $region5: #{tpu_custom_call.1} parent=1 // loop_body
      %s19 = ssub.s32 %s14, 1
      %s20 = ssub.s32 %s14, 2
      %s27 = sadd.s32 1, %s22
      %p28 = scmp.ge.s32.totalorder %s27, 1
      %s29 = scalar_select %p28, 0, %s27
      %s30 = sadd.s32 1, %s21
      %s31 = scalar_select %p28, %s30, %s21
      %p32 = scmp.ge.s32.totalorder %s31, 2
      %s33 = scalar_select %p32, 0, %s31
      %s34 = ssub.s32 %s21, %s33
      %s35 = ssub.s32 %s22, %s29
      %s36 = sor.u32 %s34, %s35
      %p37 = scmp.eq.s32.totalorder %s36, 0
      %s39 = sadd.s32 %s38, 1
      %s40 = scalar_select %p37, %s38, %s39
      %p43 = pneg %p37
      %p44 = scmp.eq.s32.totalorder %s14, 1
      %p45 = por %p43, %p44
      %p46 = scmp.ne.s32.totalorder %s38, %s41
      %p47 = scmp.eq.s32.totalorder %s14, 0
      %p48 = por %p46, %p47
      %p49 = scmp.ne.s32.totalorder %s38, %s41
      %p50 = scmp.eq.s32.totalorder %s19, 1
      %p51 = por %p49, %p50
      %p52 = scmp.ne.s32.totalorder %s41, %s42
      %p53 = scmp.eq.s32.totalorder %s19, 0
      %p54 = por %p52, %p53
      %p55 = scmp.ne.s32.totalorder %s41, %s42
      %p56 = scmp.eq.s32.totalorder %s20, 1
      %p57 = por %p55, %p56
      %p59 = scmp.ne.s32.totalorder %s42, %s58
      %p60 = scmp.eq.s32.totalorder %s20, 0
      %p61 = por %p59, %p60
      %s62 = ssub.s32 %s21, %s33
      %p63 = scmp.eq.s32.totalorder %s62, 0
      %s65 = sadd.s32 %s64, 1
      %s66 = scalar_select %p63, %s64, %s65
      %p69 = pneg %p63
      %p70 = scmp.eq.s32.totalorder %s14, 1
      %p71 = por %p69, %p70
      %p72 = scmp.ne.s32.totalorder %s64, %s67
      %p73 = scmp.eq.s32.totalorder %s14, 0
      %p74 = por %p72, %p73
      %p75 = scmp.ne.s32.totalorder %s64, %s67
      %p76 = scmp.eq.s32.totalorder %s19, 1
      %p77 = por %p75, %p76
      %p78 = scmp.ne.s32.totalorder %s67, %s68
      %p79 = scmp.eq.s32.totalorder %s19, 0
      %p80 = por %p78, %p79
      %p81 = scmp.ne.s32.totalorder %s67, %s68
      %p82 = scmp.eq.s32.totalorder %s20, 1
      %p83 = por %p81, %p82
      %p85 = scmp.ne.s32.totalorder %s68, %s84
      %p86 = scmp.eq.s32.totalorder %s20, 0
      %p87 = por %p85, %p86
      %s89 = sadd.s32 %s88, 1
      %p92 = scmp.eq.s32.totalorder %s14, 1
      %p93 = scmp.ne.s32.totalorder %s88, %s90
      %p94 = scmp.eq.s32.totalorder %s14, 0
      %p95 = por %p93, %p94
      %p96 = scmp.ne.s32.totalorder %s88, %s90
      %p97 = scmp.eq.s32.totalorder %s19, 1
      %p98 = por %p96, %p97
      %p99 = scmp.ne.s32.totalorder %s90, %s91
      %p100 = scmp.eq.s32.totalorder %s19, 0
      %p101 = por %p99, %p100
      %p102 = scmp.ne.s32.totalorder %s90, %s91
      %p103 = scmp.eq.s32.totalorder %s20, 1
      %p104 = por %p102, %p103
      %p106 = scmp.ne.s32.totalorder %s91, %s105
      %p107 = scmp.eq.s32.totalorder %s20, 0
      %p108 = por %p106, %p107
      %s110 = sadd.s32 %s109, 1
      %p113 = scmp.eq.s32.totalorder %s14, 1
      %p114 = scmp.ne.s32.totalorder %s109, %s111
      %p115 = scmp.eq.s32.totalorder %s14, 0
      %p116 = por %p114, %p115
      %p117 = scmp.ne.s32.totalorder %s109, %s111
      %p118 = scmp.eq.s32.totalorder %s19, 1
      %p119 = por %p117, %p118
      %p120 = scmp.ne.s32.totalorder %s111, %s112
      %p121 = scmp.eq.s32.totalorder %s19, 0
      %p122 = por %p120, %p121
      %p123 = scmp.ne.s32.totalorder %s111, %s112
      %p124 = scmp.eq.s32.totalorder %s20, 1
      %p125 = por %p123, %p124
      %p127 = scmp.ne.s32.totalorder %s112, %s126
      %p128 = scmp.eq.s32.totalorder %s20, 0
      %p129 = por %p127, %p128
      %s131 = sadd.s32 %s130, 1
      %p134 = scmp.eq.s32.totalorder %s14, 1
      %p135 = scmp.ne.s32.totalorder %s130, %s132
      %p136 = scmp.eq.s32.totalorder %s14, 0
      %p137 = por %p135, %p136
      %p138 = scmp.ne.s32.totalorder %s130, %s132
      %p139 = scmp.eq.s32.totalorder %s19, 1
      %p140 = por %p138, %p139
      %p141 = scmp.ne.s32.totalorder %s132, %s133
      %p142 = scmp.eq.s32.totalorder %s19, 0
      %p143 = por %p141, %p142
      %p144 = scmp.ne.s32.totalorder %s132, %s133
      %p145 = scmp.eq.s32.totalorder %s20, 1
      %p146 = por %p144, %p145
      %p148 = scmp.ne.s32.totalorder %s133, %s147
      %p149 = scmp.eq.s32.totalorder %s20, 0
      %p150 = por %p148, %p149
      %s151 = ssub.s32 %s21, %s33
      %s152 = ssub.s32 %s22, %s29
      %s153 = sor.u32 %s151, %s152
      %p154 = scmp.eq.s32.totalorder %s153, 0
      %s156 = sadd.s32 %s155, 1
      %s157 = scalar_select %p154, %s155, %s156
      %p160 = pneg %p154
      %p161 = scmp.eq.s32.totalorder %s14, 1
      %p162 = por %p160, %p161
      %p163 = scmp.ne.s32.totalorder %s155, %s158
      %p164 = scmp.eq.s32.totalorder %s14, 0
      %p165 = por %p163, %p164
      %p166 = scmp.ne.s32.totalorder %s155, %s158
      %p167 = scmp.eq.s32.totalorder %s19, 1
      %p168 = por %p166, %p167
      %p169 = scmp.ne.s32.totalorder %s158, %s159
      %p170 = scmp.eq.s32.totalorder %s19, 0
      %p171 = por %p169, %p170
      %p172 = scmp.ne.s32.totalorder %s158, %s159
      %p173 = scmp.eq.s32.totalorder %s20, 1
      %p174 = por %p172, %p173
      %p176 = scmp.ne.s32.totalorder %s159, %s175
      %p177 = scmp.eq.s32.totalorder %s20, 0
      %p178 = por %p176, %p177
      %p179 = scmp.le.s32.totalorder 1, %s14
      %p180 = scmp.lt.s32.totalorder %s14, 3
      %p181 = pnand %p179, %p180
      %p182 = pneg %p181
      // Predicated region
      $region9: #{tpu_custom_call.1} parent=5 // pred_check
        _
      $region10: #{tpu_custom_call.1} parent=5 // pred_check_branch
        %184 = sbr.rel (%p181) target = $region12
      $region11: #{tpu_custom_call.1} parent=5 // pred_region
        %s185 = ssub.s32 %s14, 1
        // Predicated region
        $region13: #{tpu_custom_call.1} parent=11 // pred_check
          %p186 = pneg %p101
        $region14: #{tpu_custom_call.1} parent=11 // pred_check_branch
          %188 = sbr.rel (%p186) target = $region16
        $region15: #{tpu_custom_call.1} parent=11 // pred_region
          _
        $region16: #{tpu_custom_call.1} parent=11 // pred_fallthru
          _
        // Predicated region
        $region17: #{tpu_custom_call.1} parent=11 // pred_check
          %p189 = pneg %p122
        $region18: #{tpu_custom_call.1} parent=11 // pred_check_branch
          %191 = sbr.rel (%p189) target = $region20
        $region19: #{tpu_custom_call.1} parent=11 // pred_region
          _
        $region20: #{tpu_custom_call.1} parent=11 // pred_fallthru
          _
        // Predicated region
        $region21: #{tpu_custom_call.1} parent=11 // pred_check
          %p192 = pneg %p143
        $region22: #{tpu_custom_call.1} parent=11 // pred_check_branch
          %194 = sbr.rel (%p192) target = $region24
        $region23: #{tpu_custom_call.1} parent=11 // pred_region
          _
        $region24: #{tpu_custom_call.1} parent=11 // pred_fallthru
          _
      $region12: #{tpu_custom_call.1} parent=5 // pred_fallthru
        _
      %p195 = scmp.lt.s32.totalorder %s14, 2
      // Predicated region
      $region25: #{tpu_custom_call.1} parent=5 // pred_check
        %p196 = pneg %p195
      $region26: #{tpu_custom_call.1} parent=5 // pred_check_branch
        %198 = sbr.rel (%p196) target = $region28
      $region27: #{tpu_custom_call.1} parent=5 // pred_region
        // Predicated region
        $region29: #{tpu_custom_call.1} parent=27 // pred_check
          %p199 = pneg %p48
        $region30: #{tpu_custom_call.1} parent=27 // pred_check_branch
          %201 = sbr.rel (%p199) target = $region32
        $region31: #{tpu_custom_call.1} parent=27 // pred_region
          %s202 = smul.u32 2, %s22
          %p203 = scmp.lt.s32.totalorder %s21, 1
          %s204 = scalar_select %p203, %s21, 1
          %p205 = scmp.lt.s32.totalorder %s202, 1
          %s206 = scalar_select %p205, %s202, 1
          %s207 = smul.addr %s204, 2
          %s208 = sadd.s32 %s206, %s207
          %s209 = smul.addr %s208, 4
          %s210 = scalar_lea.vmem %s0, %s209
          %s211 = smul.u32 2, %s22
        $region32: #{tpu_custom_call.1} parent=27 // pred_fallthru
          _
        // Predicated region
        $region33: #{tpu_custom_call.1} parent=27 // pred_check
          %p212 = pneg %p74
        $region34: #{tpu_custom_call.1} parent=27 // pred_check_branch
          %214 = sbr.rel (%p212) target = $region36
        $region35: #{tpu_custom_call.1} parent=27 // pred_region
          %p215 = scmp.lt.s32.totalorder %s21, 1
          %s216 = scalar_select %p215, %s21, 1
          %s217 = smul.addr %s216, 4
          %s218 = smul.addr %s217, 8
          %s219 = scalar_lea.vmem %s1, %s218
        $region36: #{tpu_custom_call.1} parent=27 // pred_fallthru
          _
      $region28: #{tpu_custom_call.1} parent=5 // pred_fallthru
        _
      %p220 = scmp.le.s32.totalorder 1, %s14
      %p221 = scmp.lt.s32.totalorder %s14, 3
      %p222 = pnand %p220, %p221
      %p223 = pneg %p222
      // Predicated region
      $region37: #{tpu_custom_call.1} parent=5 // pred_check
        _
      $region38: #{tpu_custom_call.1} parent=5 // pred_check_branch
        %225 = sbr.rel (%p222) target = $region40
      $region39: #{tpu_custom_call.1} parent=5 // pred_region
        %s226 = ssub.s32 %s14, 1
        %s227 = smul.u32 2, %s24
        %p228 = scmp.lt.s32.totalorder %s23, 1
        %s229 = scalar_select %p228, %s23, 1
        %p230 = scmp.lt.s32.totalorder %s227, 1
        %s231 = scalar_select %p230, %s227, 1
        %s232 = smul.addr %s229, 2
        %s233 = sadd.s32 %s231, %s232
        %s234 = smul.addr %s233, 4
        %s235 = scalar_lea.vmem %s0, %s234
        %p236 = pneg %p54
        %p237 = pneg %p51
        %p238 = scmp.lt.s32.totalorder %s23, 1
        %s239 = scalar_select %p238, %s23, 1
        %s240 = smul.addr %s239, 4
        %s241 = smul.addr %s240, 8
        %s242 = scalar_lea.vmem %s1, %s241
        %p243 = pneg %p80
        %p244 = pneg %p77
        %p245 = pneg %p101
        %p246 = pneg %p98
        %p247 = pneg %p122
        %p248 = pneg %p119
        %p249 = pneg %p143
        %p250 = pneg %p140
        %p251 = pneg %p171
        %p252 = pneg %p168
        %s253 = sand.u32 %s158, 1
        %s254 = scalar_lea.sflag [#allocation3], %s253
        %s255 = sand.u32 %s158, 1
        %s256 = smul.addr %s255, 4
        %s257 = scalar_lea.vmem [#allocation2], %s256
        %s258 = smul.u32 2, %s24
        %p259 = scmp.lt.s32.totalorder %s23, 1
        %s260 = scalar_select %p259, %s23, 1
        %p261 = scmp.lt.s32.totalorder %s258, 1
        %s262 = scalar_select %p261, %s258, 1
        %s263 = smul.addr %s260, 2
        %s264 = sadd.s32 %s262, %s263
        %s265 = smul.addr %s264, 4
        %s266 = scalar_lea.vmem %s0, %s265
        %s267 = smul.u32 2, %s24
        %p268 = scmp.lt.s32.totalorder %s23, 1
        %s269 = scalar_select %p268, %s23, 1
        %s270 = smul.addr %s269, 4
        %s271 = smul.addr %s270, 8
        %s272 = scalar_lea.vmem %s1, %s271
        %s273 = smul.u32 2, %s24
        %v274 = vld [vmem:[%s2] sm:$0xff]
        %v275 = vld [vmem:[%s2 + $0x8] sm:$0xff]
        %v276 = vld [vmem:[%s2 + $0x10] sm:$0xff]
        %v277 = vld [vmem:[%s2 + $0x18] sm:$0xff]
        %v278 = vld [vmem:[%s3] sm:$0x3]
        %v279 = vld [vmem:[%s4] sm:$0x3]
        %v280 = vld [vmem:[%s266] sm:$0xff]
        %v281 = vld [vmem:[%s272] sm:$0xff]
        %v282 = vld [vmem:[%s272 + $0x8] sm:$0xff]
        %v283 = vld [vmem:[%s272 + $0x10] sm:$0xff]
        %v284 = vld [vmem:[%s272 + $0x18] sm:$0xff]
        %286 = vset.pattern.permute.xlu0 0
        %287 = vperm.xlu0 %286, %v281
        %v288 = vpop.permute.xlu0 %287
        %291 = vset.pattern.permute.xlu0 0
        %292 = vperm.xlu0 %291, %v282
        %v293 = vpop.permute.xlu0 %292
        %296 = vset.pattern.permute.xlu0 0
        %297 = vperm.xlu0 %296, %v283
        %v298 = vpop.permute.xlu0 %297
        %301 = vset.pattern.permute.xlu0 0
        %302 = vperm.xlu0 %301, %v284
        %v303 = vpop.permute.xlu0 %302
        %306 = vst [vmem:[#allocation1] ss:$2 sm:$0xff] %v280
        %v307 = vld.sshfl [vmem:[#allocation1] sm:$0xff pattern:$0x75316420]
        %v308 = vld.sshfl [vmem:[#allocation1 + $0x8] sm:$0xff pattern:$0x75316420]
        %vm309 = vcmask 31744
        %v311 = vsel %vm309, %v274, 0
        %v314 = vsel %vm309, %v275, 0
        %v317 = vsel %vm309, %v276, 0
        %v320 = vsel %vm309, %v277, 0
        %vm322 = vcmask 1043456
        %v323 = vsel %vm322, %v307, 0
        %v325 = vsel %vm322, %v308, 0
        %327 = vmatpush.msra.mxu0 0.0
        %328 = vmatpush.msra.mxu0 0.0
        %329 = vmatpush.msra.mxu0 0.0
        %330 = vmatpush.msra.mxu0 0.0
        %331 = vmatpush.msra.mxu0 0.0
        %332 = vmatpush.msra.mxu0 0.0
        %333 = vmatpush.msra.mxu0 0.0
        %334 = vmatpush.msra.mxu0 0.0
        %335 = vmatpush.msra.mxu0 0.0
        %336 = vmatpush.msra.mxu0 0.0
        %337 = vmatpush.msra.mxu0 0.0
        %338 = vmatpush.msra.mxu0 0.0
        %339 = vmatpush.msra.mxu0 0.0
        %340 = vmatpush.msra.mxu0 0.0
        %341 = vmatpush.msra.mxu0 0.0
        %342 = vmatpush.msra.mxu0 %v323
        %343 = vmatmul.f32.gmra.mxu0 %v311
        %v344 = vpop.f32.mrf.mxu0
        %v345 = vadd.f32 %v288, %v344
        %346 = vmatmul.f32.gmra.mxu0 %v314
        %v347 = vpop.f32.mrf.mxu0
        %v348 = vadd.f32 %v293, %v347
        %349 = vmatmul.f32.gmra.mxu0 %v317
        %v350 = vpop.f32.mrf.mxu0
        %v351 = vadd.f32 %v298, %v350
        %352 = vmatmul.f32.gmra.mxu0 %v320
        %v353 = vpop.f32.mrf.mxu0
        %v354 = vadd.f32 %v303, %v353
        %355 = vdwg.mxu0
        %356 = vmatpush.msra.mxu0 0.0
        %357 = vmatpush.msra.mxu0 0.0
        %358 = vmatpush.msra.mxu0 0.0
        %359 = vmatpush.msra.mxu0 0.0
        %360 = vmatpush.msra.mxu0 0.0
        %361 = vmatpush.msra.mxu0 0.0
        %362 = vmatpush.msra.mxu0 0.0
        %363 = vmatpush.msra.mxu0 0.0
        %364 = vmatpush.msra.mxu0 0.0
        %365 = vmatpush.msra.mxu0 0.0
        %366 = vmatpush.msra.mxu0 0.0
        %367 = vmatpush.msra.mxu0 0.0
        %368 = vmatpush.msra.mxu0 0.0
        %369 = vmatpush.msra.mxu0 0.0
        %370 = vmatpush.msra.mxu0 0.0
        %371 = vmatpush.msra.mxu0 %v325
        %372 = vmatmul.f32.gmra.mxu0 %v311
        %v373 = vpop.f32.mrf.mxu0
        %v374 = vadd.f32 %v288, %v373
        %375 = vmatmul.f32.gmra.mxu0 %v314
        %v376 = vpop.f32.mrf.mxu0
        %v377 = vadd.f32 %v293, %v376
        %378 = vmatmul.f32.gmra.mxu0 %v317
        %v379 = vpop.f32.mrf.mxu0
        %v380 = vadd.f32 %v298, %v379
        %381 = vmatmul.f32.gmra.mxu0 %v320
        %v382 = vpop.f32.mrf.mxu0
        %v383 = vadd.f32 %v303, %v382
        %384 = vdwg.mxu0
        %v385 = vmax.f32 %v345, 0.0
        %v386 = vmax.f32 %v374, 0.0
        %v387 = vmax.f32 %v348, 0.0
        %v388 = vmax.f32 %v377, 0.0
        %v389 = vmax.f32 %v351, 0.0
        %v390 = vmax.f32 %v380, 0.0
        %v391 = vmax.f32 %v354, 0.0
        %v392 = vmax.f32 %v383, 0.0
        %394 = vset.pattern.permute.xlu0 0
        %395 = vperm.xlu0 %394, %v279
        %v396 = vpop.permute.xlu0 %395
        %vm398 = vcmask 261120
        %v400 = vsel %vm398, %v278, 0
        %402 = vmatpush.msra.mxu0 0.0
        %403 = vmatpush.msra.mxu0 0.0
        %404 = vmatpush.msra.mxu0 0.0
        %405 = vmatpush.msra.mxu0 0.0
        %406 = vmatpush.msra.mxu0 0.0
        %407 = vmatpush.msra.mxu0 0.0
        %408 = vmatpush.msra.mxu0 0.0
        %409 = vmatpush.msra.mxu0 0.0
        %410 = vmatpush.msra.mxu0 0.0
        %411 = vmatpush.msra.mxu0 0.0
        %412 = vmatpush.msra.mxu0 0.0
        %413 = vmatpush.msra.mxu0 0.0
        %414 = vmatpush.msra.mxu0 %v391
        %415 = vmatpush.msra.mxu0 %v389
        %416 = vmatpush.msra.mxu0 %v387
        %417 = vmatpush.msra.mxu0 %v385
        %418 = vmatmul.f32.gmra.mxu0 %v400
        %v419 = vpop.f32.mrf.mxu0
        %v420 = vadd.f32 %v396, %v419
        %421 = vdwg.mxu0
        %422 = vmatpush.msra.mxu0 0.0
        %423 = vmatpush.msra.mxu0 0.0
        %424 = vmatpush.msra.mxu0 0.0
        %425 = vmatpush.msra.mxu0 0.0
        %426 = vmatpush.msra.mxu0 0.0
        %427 = vmatpush.msra.mxu0 0.0
        %428 = vmatpush.msra.mxu0 0.0
        %429 = vmatpush.msra.mxu0 0.0
        %430 = vmatpush.msra.mxu0 0.0
        %431 = vmatpush.msra.mxu0 0.0
        %432 = vmatpush.msra.mxu0 0.0
        %433 = vmatpush.msra.mxu0 0.0
        %434 = vmatpush.msra.mxu0 %v392
        %435 = vmatpush.msra.mxu0 %v390
        %436 = vmatpush.msra.mxu0 %v388
        %437 = vmatpush.msra.mxu0 %v386
        %438 = vmatmul.f32.gmra.mxu0 %v400
        %v439 = vpop.f32.mrf.mxu0
        %v440 = vadd.f32 %v396, %v439
        %441 = vdwg.mxu0
        %v444 = vrot.slane %v440, 6
        %vm445 = vcmask 1041408
        %v446 = vsel %vm445, %v420, %v444
        %448 = vst [vmem:[%s257] sm:$0xf] %v446
        %s449 = sand.u32 %s158, 1
        %s450 = scalar_lea.sflag [#allocation3], %s449
        %s451 = sand.u32 %s158, 1
        %s452 = smul.addr %s451, 4
        %s453 = scalar_lea.vmem [#allocation2], %s452
        // Predicated region
        $region41: #{tpu_custom_call.1} parent=39 // pred_check
          %p454 = pneg %p168
        $region42: #{tpu_custom_call.1} parent=39 // pred_check_branch
          %456 = sbr.rel (%p454) target = $region44
        $region43: #{tpu_custom_call.1} parent=39 // pred_region
          %s457 = smul.u32 2, %s24
          %459 = vsyncadd %s450, 0
          %s460 = smul.addr %s23, 2
          %s461 = sadd.s32 %s457, %s460
          %s462 = smul.addr %s461, 2
          %s463 = scalar_lea.hbm %s5, %s462
          %s465 = sshll.u32 %s453, 4
          %s466 = int_to_ptr.vmem [resolvable:$true] %s465
          %s467 = sshll.u32 %s463, 4
          %s468 = int_to_ptr.hbm [resolvable:$true] %s467
          %470 = dma.vmem_to_hbm [thread:$0]  %s466, 64, %s468, %s450
        $region44: #{tpu_custom_call.1} parent=39 // pred_fallthru
          _
      $region40: #{tpu_custom_call.1} parent=5 // pred_fallthru
        _
      %p471 = scmp.le.s32.totalorder 2, %s14
      // Predicated region
      $region45: #{tpu_custom_call.1} parent=5 // pred_check
        %p472 = pneg %p471
      $region46: #{tpu_custom_call.1} parent=5 // pred_check_branch
        %474 = sbr.rel (%p472) target = $region48
      $region47: #{tpu_custom_call.1} parent=5 // pred_region
        %s475 = ssub.s32 %s14, 2
        // Predicated region
        $region49: #{tpu_custom_call.1} parent=47 // pred_check
          %p476 = pneg %p174
        $region50: #{tpu_custom_call.1} parent=47 // pred_check_branch
          %478 = sbr.rel (%p476) target = $region52
        $region51: #{tpu_custom_call.1} parent=47 // pred_region
          %s479 = sand.u32 %s159, 1
          %s480 = scalar_lea.sflag [#allocation3], %s479
          %s481 = sand.u32 %s159, 1
          %s482 = smul.addr %s481, 4
          %s483 = scalar_lea.vmem [#allocation2], %s482
          %485 = dma.done %s480, 64
        $region52: #{tpu_custom_call.1} parent=47 // pred_fallthru
          _
      $region48: #{tpu_custom_call.1} parent=5 // pred_fallthru
        _
    $region6: #{tpu_custom_call.1} parent=1 // loop_footer
      %s18 = sadd.s32 1, %s14
    $region7: #{tpu_custom_call.1} parent=1 // loop_footer_branch
      %13 = sbr.rel target = $region3
    $region8: #{tpu_custom_call.1} parent=1 // loop_exit
      _
    %486 = vsyncpa [#allocation3], 1
    %s487 = scalar_lea.sflag [#allocation3], 1
    %488 = vsyncpa %s487, 1

</llo_original>
